<compile_context>
chip_gen: v5e
topology: v5e:2x2
jax: 0.10.0
libtpu: 0.0.40
codegen_flags: <defaults>
</compile_context>

<pallas_src>
import jax
import jax.numpy as jnp
from jax.experimental import pallas as pl
from jax.experimental.pallas import tpu as pltpu

IN_FEATURES = 128
OUT_FEATURES = 32
MIN_VALUE = 0.01   # module default min_value
MAX_VALUE = 0.5    # module default max_value

# Below this batch size the fused XLA path beats Pallas launch + grid overhead
# on a memory-bound op of this size.
_SMALL_BATCH_FALLBACK = 1024


def _round_up(x: int, m: int) -> int:
    return ((x + m - 1) // m) * m


def _linear_clamp_kernel(x_ref, w_ref, b_ref, o_ref):
    # MXU matmul with f32 accumulation, then bias + clamp on the VPU.
    y = jnp.dot(x_ref[...], w_ref[...], preferred_element_type=jnp.float32)
    y = y + b_ref[...]                 # (1, 32) broadcast
    y = jnp.maximum(y, MIN_VALUE)      # clamp_min
    y = jnp.minimum(y, MAX_VALUE)      # clamp_max
    o_ref[...] = y.astype(o_ref.dtype)


def _choose_tile(batch: int, tm: int) -> int:
    """Pick a batch tile: as large as possible, sublane-aligned (x8), and with
    an even number of grid steps (>= 2) so the parallel axis splits evenly
    across v7x's two TensorCores."""
    n = max(2, pl.cdiv(batch, tm))
    if n % 2:
        n += 1
    return max(8, _round_up(pl.cdiv(batch, n), 8))


def linear_clamp(x, w_t, b, *, tm: int = 8192, force_pallas: bool = False):
    """x: (B, 128) f32, w_t: (128, 32) f32, b: (1, 32) f32 -> (B, 32) f32."""
    B = x.shape[0]

    if not force_pallas and B < _SMALL_BATCH_FALLBACK:
        # Tiny batches (incl. the module's B=1 case): fused XLA path.
        return jnp.clip(jnp.dot(x, w_t) + b, MIN_VALUE, MAX_VALUE)

    tm_eff = _choose_tile(B, tm)
    grid = (pl.cdiv(B, tm_eff),)  # partial last block handled by Pallas masking

    bytes_accessed = (B * (IN_FEATURES + OUT_FEATURES) * 4
                      + (IN_FEATURES * OUT_FEATURES + OUT_FEATURES) * 4)

    return pl.pallas_call(
        _linear_clamp_kernel,
        out_shape=jax.ShapeDtypeStruct((B, OUT_FEATURES), jnp.float32),
        grid_spec=pl.GridSpec(
            grid=grid,
            in_specs=[
                # x tile marches down the batch axis.
                pl.BlockSpec((tm_eff, IN_FEATURES), lambda i: (i, 0)),
                # Weights and bias stay resident across the whole grid.
                pl.BlockSpec((IN_FEATURES, OUT_FEATURES), lambda i: (0, 0)),
                pl.BlockSpec((1, OUT_FEATURES), lambda i: (0, 0)),
            ],
            out_specs=pl.BlockSpec((tm_eff, OUT_FEATURES), lambda i: (i, 0)),
        ),
        compiler_params=pltpu.CompilerParams(
            # Independent batch tiles -> shard across TensorCores (v7x megacore).
            dimension_semantics=("parallel",),
            vmem_limit_bytes=32 * 1024 * 1024,
        ),
        cost_estimate=pl.CostEstimate(
            flops=2 * B * IN_FEATURES * OUT_FEATURES,
            transcendentals=0,
            bytes_accessed=bytes_accessed,
        ),
    )(x, w_t, b)


if __name__ == "__main__":
    key = jax.random.PRNGKey(0)
    kx, kw, kb, kx2, kx3 = jax.random.split(key, 5)

    # Deterministic parameter init (PyTorch Linear: U(-1/sqrt(fan_in), 1/sqrt(fan_in)))
    bound = 1.0 / (IN_FEATURES ** 0.5)
    w = jax.random.uniform(kw, (OUT_FEATURES, IN_FEATURES),
                           minval=-bound, maxval=bound, dtype=jnp.float32)
    b = jax.random.uniform(kb, (OUT_FEATURES,),
                           minval=-bound, maxval=bound, dtype=jnp.float32)

    w_t = w.T                          # (128, 32) for x @ W^T
    b2 = b.reshape(1, OUT_FEATURES)    # 2-D bias for TPU-friendly broadcast

    def ref(x):
        return jnp.clip(x @ w_t + b2, MIN_VALUE, MAX_VALUE)

    # 1) Module-spec shape: x1 = torch.randn(1, 128) -> small-batch fused path.
    x_small = jax.random.normal(kx, (1, IN_FEATURES), dtype=jnp.float32)
    out_small = linear_clamp(x_small, w_t, b2)
    jax.block_until_ready(out_small)
    assert out_small.shape == (1, OUT_FEATURES)
    assert jnp.allclose(out_small, ref(x_small), atol=1e-5, rtol=1e-5)

    # 2) Pallas path, evenly tiled grid: B=2048 -> 2 x 1024-row tiles (no tail).
    x_even = jax.random.normal(kx2, (2048, IN_FEATURES), dtype=jnp.float32)
    out_even = linear_clamp(x_even, w_t, b2)
    jax.block_until_ready(out_even)
    assert out_even.shape == (2048, OUT_FEATURES)
    assert jnp.allclose(out_even, ref(x_even), atol=1e-5, rtol=1e-5)

    # 3) Pallas path, ragged batch: B=1100 -> 552-row tiles, partial last block
    #    masked by Pallas (no wrapper padding, no output slice copy).
    x_rag = jax.random.normal(kx3, (1100, IN_FEATURES), dtype=jnp.float32)
    out_rag = linear_clamp(x_rag, w_t, b2)
    jax.block_until_ready(out_rag)
    assert out_rag.shape == (1100, OUT_FEATURES)
    assert jnp.allclose(out_rag, ref(x_rag), atol=1e-5, rtol=1e-5)

    print("KERNEL_OK")
</pallas_src>

<mosaic_0001>
module attributes {stable_mosaic.version = 11 : i64} {
  func.func @_linear_clamp_kernel(%arg0: i32, %arg1: memref<1024x128xf32, #tpu.memory_space<vmem>>, %arg2: memref<128x32xf32, #tpu.memory_space<vmem>>, %arg3: memref<1x32xf32, #tpu.memory_space<vmem>>, %arg4: memref<1024x32xf32, #tpu.memory_space<vmem>>) attributes {dimension_semantics = [#tpu.dimension_semantics<parallel>], iteration_bounds = array<i64: 2>, scalar_prefetch = 0 : i64, scratch_operands = 0 : i64, tpu.core_type = #tpu.core_type<tc>, window_params = [{transform_indices = @transform_0, window_bounds = array<i64: 1024, 128>}, {pipeline_mode = #tpu.pipeline_mode<synchronous>, transform_indices = @transform_1, window_bounds = array<i64: 128, 32>}, {pipeline_mode = #tpu.pipeline_mode<synchronous>, transform_indices = @transform_2, window_bounds = array<i64: 1, 32>}, {transform_indices = @transform_3, window_bounds = array<i64: 1024, 32>}]} {
    %c0 = arith.constant 0 : index
    %c0_0 = arith.constant 0 : index
    %0 = vector.load %arg1[%c0, %c0_0] : memref<1024x128xf32, #tpu.memory_space<vmem>>, vector<1024x128xf32>
    %c0_1 = arith.constant 0 : index
    %c0_2 = arith.constant 0 : index
    %1 = vector.load %arg2[%c0_1, %c0_2] : memref<128x32xf32, #tpu.memory_space<vmem>>, vector<128x32xf32>
    %cst = arith.constant dense<0.000000e+00> : vector<1024x32xf32>
    %2 = tpu.matmul %0, %1, %cst {dimension_numbers = #tpu.dot_dimension_numbers<[1], [0], [0], [1], [0, 0, 1, 1], [], []>} : vector<1024x128xf32>, vector<128x32xf32>, vector<1024x32xf32> -> vector<1024x32xf32>
    %c0_3 = arith.constant 0 : index
    %c0_4 = arith.constant 0 : index
    %3 = vector.load %arg3[%c0_3, %c0_4] : memref<1x32xf32, #tpu.memory_space<vmem>>, vector<1x32xf32>
    %4 = vector.broadcast %3 : vector<1x32xf32> to vector<1024x32xf32>
    %5 = arith.addf %2, %4 : vector<1024x32xf32>
    %cst_5 = arith.constant 0.00999999977 : f32
    %6 = vector.broadcast %cst_5 : f32 to vector<1024x32xf32>
    %7 = arith.maximumf %5, %6 : vector<1024x32xf32>
    %cst_6 = arith.constant 5.000000e-01 : f32
    %8 = vector.broadcast %cst_6 : f32 to vector<1024x32xf32>
    %9 = arith.minimumf %7, %8 : vector<1024x32xf32>
    %c0_7 = arith.constant 0 : index
    %c0_8 = arith.constant 0 : index
    %10 = vector.load %arg4[%c0_7, %c0_8] : memref<1024x32xf32, #tpu.memory_space<vmem>>, vector<1024x32xf32>
    tpu.vector_store %arg4[%c0_7, %c0_8], %9 {strides = array<i32>} : memref<1024x32xf32, #tpu.memory_space<vmem>>, vector<1024x32xf32>,
    return
  }
  func.func @transform_0(%arg0: i32) -> (i32, i32) {
    %c0_i32 = arith.constant 0 : i32
    %c0_i32_0 = arith.constant 0 : i32
    return %arg0, %c0_i32 : i32, i32
  }
  func.func @transform_1(%arg0: i32) -> (i32, i32) {
    %c0_i32 = arith.constant 0 : i32
    %c0_i32_0 = arith.constant 0 : i32
    %c0_i32_1 = arith.constant 0 : i32
    return %c0_i32, %c0_i32_0 : i32, i32
  }
  func.func @transform_2(%arg0: i32) -> (i32, i32) {
    %c0_i32 = arith.constant 0 : i32
    %c0_i32_0 = arith.constant 0 : i32
    %c0_i32_1 = arith.constant 0 : i32
    return %c0_i32, %c0_i32_0 : i32, i32
  }
  func.func @transform_3(%arg0: i32) -> (i32, i32) {
    %c0_i32 = arith.constant 0 : i32
    %c0_i32_0 = arith.constant 0 : i32
    return %arg0, %c0_i32 : i32, i32
  }
}

</mosaic_0001>

<llo_original>
// kernel: tpu_custom_call.1
$region0: #{tpu_custom_call.1}
  #allocation0 [shape = 'u32[]', space=smem, size = 0x4, offset = 0x4, fixed_abs, tag = 'smem constant byte address 0x4 - core index']
  #allocation1 [shape = 'u32[72,128]{1,0:T(1,128)}', space=vmem, size = 0x9000, scoped, tag = 'internal scratch']
  %s0 = inlined_call_operand.hbm [shape: f32[2048,128], index: 0, kind: input, shape index: {}]
  %s1 = inlined_call_operand.vmem [shape: f32[128,32], index: 1, kind: input, shape index: {}]
  %s2 = inlined_call_operand.vmem [shape: f32[1,32], index: 2, kind: input, shape index: {}]
  %s3 = inlined_call_operand.vmem [shape: f32[2048,32], index: 3, kind: output, shape index: {}]
  %s4 = sld [smem:[#allocation0]]
  $region49: #{tpu_custom_call.1} parent=0
    _
  %s6 = ssub.s32 1, %s4
  %s7 = scalar_select 0, %s6, %s4
  $region1: #{tpu_custom_call.1} parent=0
    #allocation2 [shape = 'u8[1048576]{0}', space=vmem, size = 0x100000, scoped, tag = 'input window, operand 0']
    #allocation3 [shape = 's32[2]{0}', space=sflag, size = 0x8, scoped, tag = 'scoped memory for tpu_custom_call.1']
    %8 = vsyncpa [#allocation3], 0
    %s9 = scalar_lea.sflag [#allocation3], 1
    %10 = vsyncpa %s9, 0
    loop: start=0, step=1, limit=4
    $region2: #{tpu_custom_call.1} parent=1 // loop_pre_header
      _
    $region3: #{tpu_custom_call.1} parent=1 // loop_header
      %s12 = sphi 0, %s16
      %p13 = scmp.ge.s32.totalorder %s12, 4
      %s22 = sphi 0, %s24
      %s25 = sphi 0, %s22
      %s26 = sphi 0, %s25
      %s42 = sphi 0, %s26
      %s46 = sphi 0, %s46
      %s48 = sphi 0, %s46
      %s49 = sphi 0, %s48
      %s63 = sphi 0, %s49
      %s67 = sphi 0, %s67
      %s69 = sphi 0, %s67
      %s70 = sphi 0, %s69
      %s84 = sphi 0, %s70
      %s90 = sphi 0, %s92
      %s93 = sphi 0, %s90
      %s94 = sphi 0, %s93
      %s110 = sphi 0, %s94
    $region4: #{tpu_custom_call.1} parent=1 // loop_header_branch
      %15 = sbr.rel (%p13) target = $region8
    $region5: #{tpu_custom_call.1} parent=1 // loop_body
      %s17 = ssub.s32 %s12, 1
      %s18 = ssub.s32 %s12, 2
      %s19 = sadd.s32 %s12, 1
      %s20 = ssub.s32 %s12, %s19
      %p21 = scmp.eq.s32.totalorder %s20, 0
      %s23 = sadd.s32 %s22, 1
      %s24 = scalar_select %p21, %s22, %s23
      %p27 = pneg %p21
      %p28 = scmp.eq.s32.totalorder %s12, 1
      %p29 = por %p27, %p28
      %p30 = scmp.ne.s32.totalorder %s22, %s25
      %p31 = scmp.eq.s32.totalorder %s12, 0
      %p32 = por %p30, %p31
      %p33 = scmp.ne.s32.totalorder %s22, %s25
      %p34 = scmp.eq.s32.totalorder %s17, 1
      %p35 = por %p33, %p34
      %p36 = scmp.ne.s32.totalorder %s25, %s26
      %p37 = scmp.eq.s32.totalorder %s17, 0
      %p38 = por %p36, %p37
      %p39 = scmp.ne.s32.totalorder %s25, %s26
      %p40 = scmp.eq.s32.totalorder %s18, 1
      %p41 = por %p39, %p40
      %p43 = scmp.ne.s32.totalorder %s26, %s42
      %p44 = scmp.eq.s32.totalorder %s18, 0
      %p45 = por %p43, %p44
      %s47 = sadd.s32 %s46, 1
      %p50 = scmp.eq.s32.totalorder %s12, 1
      %p51 = scmp.ne.s32.totalorder %s46, %s48
      %p52 = scmp.eq.s32.totalorder %s12, 0
      %p53 = por %p51, %p52
      %p54 = scmp.ne.s32.totalorder %s46, %s48
      %p55 = scmp.eq.s32.totalorder %s17, 1
      %p56 = por %p54, %p55
      %p57 = scmp.ne.s32.totalorder %s48, %s49
      %p58 = scmp.eq.s32.totalorder %s17, 0
      %p59 = por %p57, %p58
      %p60 = scmp.ne.s32.totalorder %s48, %s49
      %p61 = scmp.eq.s32.totalorder %s18, 1
      %p62 = por %p60, %p61
      %p64 = scmp.ne.s32.totalorder %s49, %s63
      %p65 = scmp.eq.s32.totalorder %s18, 0
      %p66 = por %p64, %p65
      %s68 = sadd.s32 %s67, 1
      %p71 = scmp.eq.s32.totalorder %s12, 1
      %p72 = scmp.ne.s32.totalorder %s67, %s69
      %p73 = scmp.eq.s32.totalorder %s12, 0
      %p74 = por %p72, %p73
      %p75 = scmp.ne.s32.totalorder %s67, %s69
      %p76 = scmp.eq.s32.totalorder %s17, 1
      %p77 = por %p75, %p76
      %p78 = scmp.ne.s32.totalorder %s69, %s70
      %p79 = scmp.eq.s32.totalorder %s17, 0
      %p80 = por %p78, %p79
      %p81 = scmp.ne.s32.totalorder %s69, %s70
      %p82 = scmp.eq.s32.totalorder %s18, 1
      %p83 = por %p81, %p82
      %p85 = scmp.ne.s32.totalorder %s70, %s84
      %p86 = scmp.eq.s32.totalorder %s18, 0
      %p87 = por %p85, %p86
      %s88 = ssub.s32 %s12, %s19
      %p89 = scmp.eq.s32.totalorder %s88, 0
      %s91 = sadd.s32 %s90, 1
      %s92 = scalar_select %p89, %s90, %s91
      %p95 = pneg %p89
      %p96 = scmp.eq.s32.totalorder %s12, 1
      %p97 = por %p95, %p96
      %p98 = scmp.ne.s32.totalorder %s90, %s93
      %p99 = scmp.eq.s32.totalorder %s12, 0
      %p100 = por %p98, %p99
      %p101 = scmp.ne.s32.totalorder %s90, %s93
      %p102 = scmp.eq.s32.totalorder %s17, 1
      %p103 = por %p101, %p102
      %p104 = scmp.ne.s32.totalorder %s93, %s94
      %p105 = scmp.eq.s32.totalorder %s17, 0
      %p106 = por %p104, %p105
      %p107 = scmp.ne.s32.totalorder %s93, %s94
      %p108 = scmp.eq.s32.totalorder %s18, 1
      %p109 = por %p107, %p108
      %p111 = scmp.ne.s32.totalorder %s94, %s110
      %p112 = scmp.eq.s32.totalorder %s18, 0
      %p113 = por %p111, %p112
      %p114 = scmp.le.s32.totalorder 1, %s12
      %p115 = scmp.lt.s32.totalorder %s12, 3
      %p116 = pnand %p114, %p115
      %p117 = pneg %p116
      // Predicated region
      $region9: #{tpu_custom_call.1} parent=5 // pred_check
        _
      $region10: #{tpu_custom_call.1} parent=5 // pred_check_branch
        %119 = sbr.rel (%p116) target = $region12
      $region11: #{tpu_custom_call.1} parent=5 // pred_region
        %s120 = ssub.s32 %s12, 1
        // Predicated region
        $region13: #{tpu_custom_call.1} parent=11 // pred_check
          %p121 = pneg %p59
        $region14: #{tpu_custom_call.1} parent=11 // pred_check_branch
          %123 = sbr.rel (%p121) target = $region16
        $region15: #{tpu_custom_call.1} parent=11 // pred_region
          _
        $region16: #{tpu_custom_call.1} parent=11 // pred_fallthru
          _
        // Predicated region
        $region17: #{tpu_custom_call.1} parent=11 // pred_check
          %p124 = pneg %p80
        $region18: #{tpu_custom_call.1} parent=11 // pred_check_branch
          %126 = sbr.rel (%p124) target = $region20
        $region19: #{tpu_custom_call.1} parent=11 // pred_region
          _
        $region20: #{tpu_custom_call.1} parent=11 // pred_fallthru
          _
      $region12: #{tpu_custom_call.1} parent=5 // pred_fallthru
        _
      %p127 = scmp.lt.s32.totalorder %s12, 2
      // Predicated region
      $region21: #{tpu_custom_call.1} parent=5 // pred_check
        %p128 = pneg %p127
      $region22: #{tpu_custom_call.1} parent=5 // pred_check_branch
        %130 = sbr.rel (%p128) target = $region24
      $region23: #{tpu_custom_call.1} parent=5 // pred_region
        // Predicated region
        $region25: #{tpu_custom_call.1} parent=23 // pred_check
          %p131 = pneg %p32
        $region26: #{tpu_custom_call.1} parent=23 // pred_check_branch
          %133 = sbr.rel (%p131) target = $region28
        $region27: #{tpu_custom_call.1} parent=23 // pred_region
          %s134 = sand.u32 %s22, 1
          %s135 = scalar_lea.sflag [#allocation3], %s134
          %s136 = sand.u32 %s22, 1
          %s137 = smul.addr %s136, 1024
          %s138 = scalar_lea.vmem [#allocation2], %s137
          %s139 = smul.u32 128, %s12
          %141 = vsyncadd %s135, 0
          %s142 = smul.addr %s139, 8
          %s143 = scalar_lea.hbm %s0, %s142
          %s144 = sshll.u32 %s143, 4
          %s145 = int_to_ptr.hbm [resolvable:$true] %s144
          %s146 = sshll.u32 %s138, 4
          %s147 = int_to_ptr.vmem [resolvable:$true] %s146
          %152 = dma.hbm_to_vmem [thread:$0]  %s145, 16384, %s147, %s135, 128, 128, 8
        $region28: #{tpu_custom_call.1} parent=23 // pred_fallthru
          _
      $region24: #{tpu_custom_call.1} parent=5 // pred_fallthru
        _
      %p153 = scmp.le.s32.totalorder 1, %s12
      %p154 = scmp.lt.s32.totalorder %s12, 3
      %p155 = pnand %p153, %p154
      %p156 = pneg %p155
      // Predicated region
      $region29: #{tpu_custom_call.1} parent=5 // pred_check
        _
      $region30: #{tpu_custom_call.1} parent=5 // pred_check_branch
        %158 = sbr.rel (%p155) target = $region32
      $region31: #{tpu_custom_call.1} parent=5 // pred_region
        %s159 = ssub.s32 %s12, 1
        %s160 = sand.u32 %s25, 1
        %s161 = scalar_lea.sflag [#allocation3], %s160
        %s162 = sand.u32 %s25, 1
        %s163 = smul.addr %s162, 1024
        %s164 = scalar_lea.vmem [#allocation2], %s163
        // Predicated region
        $region33: #{tpu_custom_call.1} parent=31 // pred_check
          %p165 = pneg %p38
        $region34: #{tpu_custom_call.1} parent=31 // pred_check_branch
          %167 = sbr.rel (%p165) target = $region36
        $region35: #{tpu_custom_call.1} parent=31 // pred_region
          %169 = dma.done %s161, 16384
        $region36: #{tpu_custom_call.1} parent=31 // pred_fallthru
          _
        %s170 = sand.u32 %s25, 1
        %s171 = scalar_lea.sflag [#allocation3], %s170
        %s172 = sand.u32 %s25, 1
        %s173 = smul.addr %s172, 1024
        %s174 = scalar_lea.vmem [#allocation2], %s173
        %p175 = pneg %p38
        %p176 = pneg %p35
        %p177 = pneg %p59
        %p178 = pneg %p56
        %p179 = pneg %p80
        %p180 = pneg %p77
        %p181 = pneg %p106
        %p182 = pneg %p103
        %s183 = smul.u32 128, %s17
        %p184 = scmp.lt.s32.totalorder %s183, 255
        %s185 = scalar_select %p184, %s183, 255
        %s186 = smul.addr %s185, 8
        %s187 = scalar_lea.vmem %s3, %s186
        %s188 = smul.u32 128, %s17
        %s189 = smul.u32 128, %s17
        %p190 = scmp.lt.s32.totalorder %s189, 255
        %s191 = scalar_select %p190, %s189, 255
        %s192 = smul.addr %s191, 8
        %s193 = scalar_lea.vmem %s3, %s192
        %s194 = smul.u32 128, %s17
        %v195 = vld [vmem:[%s164] sm:$0xff]
        %v196 = vld [vmem:[%s164 + $0x8] sm:$0xff]
        %v197 = vld [vmem:[%s164 + $0x10] sm:$0xff]
        %v198 = vld [vmem:[%s164 + $0x18] sm:$0xff]
        %v199 = vld [vmem:[%s164 + $0x20] sm:$0xff]
        %v200 = vld [vmem:[%s164 + $0x28] sm:$0xff]
        %v201 = vld [vmem:[%s164 + $0x30] sm:$0xff]
        %v202 = vld [vmem:[%s164 + $0x38] sm:$0xff]
        %v203 = vld [vmem:[%s164 + $0x40] sm:$0xff]
        %v204 = vld [vmem:[%s164 + $0x48] sm:$0xff]
        %v205 = vld [vmem:[%s164 + $0x50] sm:$0xff]
        %v206 = vld [vmem:[%s164 + $0x58] sm:$0xff]
        %v207 = vld [vmem:[%s164 + $0x60] sm:$0xff]
        %v208 = vld [vmem:[%s164 + $0x68] sm:$0xff]
        %v209 = vld [vmem:[%s164 + $0x70] sm:$0xff]
        %v210 = vld [vmem:[%s164 + $0x78] sm:$0xff]
        %v211 = vld [vmem:[%s164 + $0x80] sm:$0xff]
        %v212 = vld [vmem:[%s164 + $0x88] sm:$0xff]
        %v213 = vld [vmem:[%s164 + $0x90] sm:$0xff]
        %v214 = vld [vmem:[%s164 + $0x98] sm:$0xff]
        %v215 = vld [vmem:[%s164 + $0xa0] sm:$0xff]
        %v216 = vld [vmem:[%s164 + $0xa8] sm:$0xff]
        %v217 = vld [vmem:[%s164 + $0xb0] sm:$0xff]
        %v218 = vld [vmem:[%s164 + $0xb8] sm:$0xff]
        %v219 = vld [vmem:[%s164 + $0xc0] sm:$0xff]
        %v220 = vld [vmem:[%s164 + $0xc8] sm:$0xff]
        %v221 = vld [vmem:[%s164 + $0xd0] sm:$0xff]
        %v222 = vld [vmem:[%s164 + $0xd8] sm:$0xff]
        %v223 = vld [vmem:[%s164 + $0xe0] sm:$0xff]
        %v224 = vld [vmem:[%s164 + $0xe8] sm:$0xff]
        %v225 = vld [vmem:[%s164 + $0xf0] sm:$0xff]
        %v226 = vld [vmem:[%s164 + $0xf8] sm:$0xff]
        %v227 = vld [vmem:[%s164 + $0x100] sm:$0xff]
        %v228 = vld [vmem:[%s164 + $0x108] sm:$0xff]
        %v229 = vld [vmem:[%s164 + $0x110] sm:$0xff]
        %v230 = vld [vmem:[%s164 + $0x118] sm:$0xff]
        %v231 = vld [vmem:[%s164 + $0x120] sm:$0xff]
        %v232 = vld [vmem:[%s164 + $0x128] sm:$0xff]
        %v233 = vld [vmem:[%s164 + $0x130] sm:$0xff]
        %v234 = vld [vmem:[%s164 + $0x138] sm:$0xff]
        %v235 = vld [vmem:[%s164 + $0x140] sm:$0xff]
        %v236 = vld [vmem:[%s164 + $0x148] sm:$0xff]
        %v237 = vld [vmem:[%s164 + $0x150] sm:$0xff]
        %v238 = vld [vmem:[%s164 + $0x158] sm:$0xff]
        %v239 = vld [vmem:[%s164 + $0x160] sm:$0xff]
        %v240 = vld [vmem:[%s164 + $0x168] sm:$0xff]
        %v241 = vld [vmem:[%s164 + $0x170] sm:$0xff]
        %v242 = vld [vmem:[%s164 + $0x178] sm:$0xff]
        %v243 = vld [vmem:[%s164 + $0x180] sm:$0xff]
        %v244 = vld [vmem:[%s164 + $0x188] sm:$0xff]
        %v245 = vld [vmem:[%s164 + $0x190] sm:$0xff]
        %v246 = vld [vmem:[%s164 + $0x198] sm:$0xff]
        %v247 = vld [vmem:[%s164 + $0x1a0] sm:$0xff]
        %v248 = vld [vmem:[%s164 + $0x1a8] sm:$0xff]
        %v249 = vld [vmem:[%s164 + $0x1b0] sm:$0xff]
        %v250 = vld [vmem:[%s164 + $0x1b8] sm:$0xff]
        %v251 = vld [vmem:[%s164 + $0x1c0] sm:$0xff]
        %v252 = vld [vmem:[%s164 + $0x1c8] sm:$0xff]
        %v253 = vld [vmem:[%s164 + $0x1d0] sm:$0xff]
        %v254 = vld [vmem:[%s164 + $0x1d8] sm:$0xff]
        %v255 = vld [vmem:[%s164 + $0x1e0] sm:$0xff]
        %v256 = vld [vmem:[%s164 + $0x1e8] sm:$0xff]
        %v257 = vld [vmem:[%s164 + $0x1f0] sm:$0xff]
        %v258 = vld [vmem:[%s164 + $0x1f8] sm:$0xff]
        %v259 = vld [vmem:[%s164 + $0x200] sm:$0xff]
        %v260 = vld [vmem:[%s164 + $0x208] sm:$0xff]
        %v261 = vld [vmem:[%s164 + $0x210] sm:$0xff]
        %v262 = vld [vmem:[%s164 + $0x218] sm:$0xff]
        %v263 = vld [vmem:[%s164 + $0x220] sm:$0xff]
        %v264 = vld [vmem:[%s164 + $0x228] sm:$0xff]
        %v265 = vld [vmem:[%s164 + $0x230] sm:$0xff]
        %v266 = vld [vmem:[%s164 + $0x238] sm:$0xff]
        %v267 = vld [vmem:[%s164 + $0x240] sm:$0xff]
        %v268 = vld [vmem:[%s164 + $0x248] sm:$0xff]
        %v269 = vld [vmem:[%s164 + $0x250] sm:$0xff]
        %v270 = vld [vmem:[%s164 + $0x258] sm:$0xff]
        %v271 = vld [vmem:[%s164 + $0x260] sm:$0xff]
        %v272 = vld [vmem:[%s164 + $0x268] sm:$0xff]
        %v273 = vld [vmem:[%s164 + $0x270] sm:$0xff]
        %v274 = vld [vmem:[%s164 + $0x278] sm:$0xff]
        %v275 = vld [vmem:[%s164 + $0x280] sm:$0xff]
        %v276 = vld [vmem:[%s164 + $0x288] sm:$0xff]
        %v277 = vld [vmem:[%s164 + $0x290] sm:$0xff]
        %v278 = vld [vmem:[%s164 + $0x298] sm:$0xff]
        %v279 = vld [vmem:[%s164 + $0x2a0] sm:$0xff]
        %v280 = vld [vmem:[%s164 + $0x2a8] sm:$0xff]
        %v281 = vld [vmem:[%s164 + $0x2b0] sm:$0xff]
        %v282 = vld [vmem:[%s164 + $0x2b8] sm:$0xff]
        %v283 = vld [vmem:[%s164 + $0x2c0] sm:$0xff]
        %v284 = vld [vmem:[%s164 + $0x2c8] sm:$0xff]
        %v285 = vld [vmem:[%s164 + $0x2d0] sm:$0xff]
        %v286 = vld [vmem:[%s164 + $0x2d8] sm:$0xff]
        %v287 = vld [vmem:[%s164 + $0x2e0] sm:$0xff]
        %v288 = vld [vmem:[%s164 + $0x2e8] sm:$0xff]
        %v289 = vld [vmem:[%s164 + $0x2f0] sm:$0xff]
        %v290 = vld [vmem:[%s164 + $0x2f8] sm:$0xff]
        %v291 = vld [vmem:[%s164 + $0x300] sm:$0xff]
        %v292 = vld [vmem:[%s164 + $0x308] sm:$0xff]
        %v293 = vld [vmem:[%s164 + $0x310] sm:$0xff]
        %v294 = vld [vmem:[%s164 + $0x318] sm:$0xff]
        %v295 = vld [vmem:[%s164 + $0x320] sm:$0xff]
        %v296 = vld [vmem:[%s164 + $0x328] sm:$0xff]
        %v297 = vld [vmem:[%s164 + $0x330] sm:$0xff]
        %v298 = vld [vmem:[%s164 + $0x338] sm:$0xff]
        %v299 = vld [vmem:[%s164 + $0x340] sm:$0xff]
        %v300 = vld [vmem:[%s164 + $0x348] sm:$0xff]
        %v301 = vld [vmem:[%s164 + $0x350] sm:$0xff]
        %v302 = vld [vmem:[%s164 + $0x358] sm:$0xff]
        %v303 = vld [vmem:[%s164 + $0x360] sm:$0xff]
        %v304 = vld [vmem:[%s164 + $0x368] sm:$0xff]
        %v305 = vld [vmem:[%s164 + $0x370] sm:$0xff]
        %v306 = vld [vmem:[%s164 + $0x378] sm:$0xff]
        %v307 = vld [vmem:[%s164 + $0x380] sm:$0xff]
        %v308 = vld [vmem:[%s164 + $0x388] sm:$0xff]
        %v309 = vld [vmem:[%s164 + $0x390] sm:$0xff]
        %v310 = vld [vmem:[%s164 + $0x398] sm:$0xff]
        %v311 = vld [vmem:[%s164 + $0x3a0] sm:$0xff]
        %v312 = vld [vmem:[%s164 + $0x3a8] sm:$0xff]
        %v313 = vld [vmem:[%s164 + $0x3b0] sm:$0xff]
        %v314 = vld [vmem:[%s164 + $0x3b8] sm:$0xff]
        %v315 = vld [vmem:[%s164 + $0x3c0] sm:$0xff]
        %v316 = vld [vmem:[%s164 + $0x3c8] sm:$0xff]
        %v317 = vld [vmem:[%s164 + $0x3d0] sm:$0xff]
        %v318 = vld [vmem:[%s164 + $0x3d8] sm:$0xff]
        %v319 = vld [vmem:[%s164 + $0x3e0] sm:$0xff]
        %v320 = vld [vmem:[%s164 + $0x3e8] sm:$0xff]
        %v321 = vld [vmem:[%s164 + $0x3f0] sm:$0xff]
        %v322 = vld [vmem:[%s164 + $0x3f8] sm:$0xff]
        %v323 = vld [vmem:[%s1] sm:$0xff]
        %v324 = vld [vmem:[%s1 + $0x8] sm:$0xff]
        %v325 = vld [vmem:[%s1 + $0x10] sm:$0xff]
        %v326 = vld [vmem:[%s1 + $0x18] sm:$0xff]
        %v327 = vld [vmem:[%s1 + $0x20] sm:$0xff]
        %v328 = vld [vmem:[%s1 + $0x28] sm:$0xff]
        %v329 = vld [vmem:[%s1 + $0x30] sm:$0xff]
        %v330 = vld [vmem:[%s1 + $0x38] sm:$0xff]
        %v331 = vld [vmem:[%s1 + $0x40] sm:$0xff]
        %v332 = vld [vmem:[%s1 + $0x48] sm:$0xff]
        %v333 = vld [vmem:[%s1 + $0x50] sm:$0xff]
        %v334 = vld [vmem:[%s1 + $0x58] sm:$0xff]
        %v335 = vld [vmem:[%s1 + $0x60] sm:$0xff]
        %v336 = vld [vmem:[%s1 + $0x68] sm:$0xff]
        %v337 = vld [vmem:[%s1 + $0x70] sm:$0xff]
        %v338 = vld [vmem:[%s1 + $0x78] sm:$0xff]
        %v339 = vld [vmem:[%s2] sm:$0x1]
        %v341 = vperm.slane %v339, 0
        %343 = vmatpush.msra.mxu0 %v338
        %344 = vmatpush.msra.mxu0 %v337
        %345 = vmatpush.msra.mxu0 %v336
        %346 = vmatpush.msra.mxu0 %v335
        %347 = vmatpush.msra.mxu0 %v334
        %348 = vmatpush.msra.mxu0 %v333
        %349 = vmatpush.msra.mxu0 %v332
        %350 = vmatpush.msra.mxu0 %v331
        %351 = vmatpush.msra.mxu0 %v330
        %352 = vmatpush.msra.mxu0 %v329
        %353 = vmatpush.msra.mxu0 %v328
        %354 = vmatpush.msra.mxu0 %v327
        %355 = vmatpush.msra.mxu0 %v326
        %356 = vmatpush.msra.mxu0 %v325
        %357 = vmatpush.msra.mxu0 %v324
        %358 = vmatpush.msra.mxu0 %v323
        %359 = vmatmul.f32.gmra.mxu0 %v195
        %v360 = vpop.f32.mrf.mxu0
        %v361 = vadd.f32 %v341, %v360
        %362 = vmatmul.f32.gmra.mxu0 %v196
        %v363 = vpop.f32.mrf.mxu0
        %v364 = vadd.f32 %v341, %v363
        %365 = vmatmul.f32.gmra.mxu0 %v197
        %v366 = vpop.f32.mrf.mxu0
        %v367 = vadd.f32 %v341, %v366
        %368 = vmatmul.f32.gmra.mxu0 %v198
        %v369 = vpop.f32.mrf.mxu0
        %v370 = vadd.f32 %v341, %v369
        %371 = vmatmul.f32.gmra.mxu0 %v199
        %v372 = vpop.f32.mrf.mxu0
        %v373 = vadd.f32 %v341, %v372
        %374 = vmatmul.f32.gmra.mxu0 %v200
        %v375 = vpop.f32.mrf.mxu0
        %v376 = vadd.f32 %v341, %v375
        %377 = vmatmul.f32.gmra.mxu0 %v201
        %v378 = vpop.f32.mrf.mxu0
        %v379 = vadd.f32 %v341, %v378
        %380 = vmatmul.f32.gmra.mxu0 %v202
        %v381 = vpop.f32.mrf.mxu0
        %v382 = vadd.f32 %v341, %v381
        %383 = vmatmul.f32.gmra.mxu0 %v203
        %v384 = vpop.f32.mrf.mxu0
        %v385 = vadd.f32 %v341, %v384
        %386 = vmatmul.f32.gmra.mxu0 %v204
        %v387 = vpop.f32.mrf.mxu0
        %v388 = vadd.f32 %v341, %v387
        %389 = vmatmul.f32.gmra.mxu0 %v205
        %v390 = vpop.f32.mrf.mxu0
        %v391 = vadd.f32 %v341, %v390
        %392 = vmatmul.f32.gmra.mxu0 %v206
        %v393 = vpop.f32.mrf.mxu0
        %v394 = vadd.f32 %v341, %v393
        %395 = vmatmul.f32.gmra.mxu0 %v207
        %v396 = vpop.f32.mrf.mxu0
        %v397 = vadd.f32 %v341, %v396
        %398 = vmatmul.f32.gmra.mxu0 %v208
        %v399 = vpop.f32.mrf.mxu0
        %v400 = vadd.f32 %v341, %v399
        %401 = vmatmul.f32.gmra.mxu0 %v209
        %v402 = vpop.f32.mrf.mxu0
        %v403 = vadd.f32 %v341, %v402
        %404 = vmatmul.f32.gmra.mxu0 %v210
        %v405 = vpop.f32.mrf.mxu0
        %v406 = vadd.f32 %v341, %v405
        %407 = vmatmul.f32.gmra.mxu0 %v211
        %v408 = vpop.f32.mrf.mxu0
        %v409 = vadd.f32 %v341, %v408
        %410 = vmatmul.f32.gmra.mxu0 %v212
        %v411 = vpop.f32.mrf.mxu0
        %v412 = vadd.f32 %v341, %v411
        %413 = vmatmul.f32.gmra.mxu0 %v213
        %v414 = vpop.f32.mrf.mxu0
        %v415 = vadd.f32 %v341, %v414
        %416 = vmatmul.f32.gmra.mxu0 %v214
        %v417 = vpop.f32.mrf.mxu0
        %v418 = vadd.f32 %v341, %v417
        %419 = vmatmul.f32.gmra.mxu0 %v215
        %v420 = vpop.f32.mrf.mxu0
        %v421 = vadd.f32 %v341, %v420
        %422 = vmatmul.f32.gmra.mxu0 %v216
        %v423 = vpop.f32.mrf.mxu0
        %v424 = vadd.f32 %v341, %v423
        %425 = vmatmul.f32.gmra.mxu0 %v217
        %v426 = vpop.f32.mrf.mxu0
        %v427 = vadd.f32 %v341, %v426
        %428 = vmatmul.f32.gmra.mxu0 %v218
        %v429 = vpop.f32.mrf.mxu0
        %v430 = vadd.f32 %v341, %v429
        %431 = vmatmul.f32.gmra.mxu0 %v219
        %v432 = vpop.f32.mrf.mxu0
        %v433 = vadd.f32 %v341, %v432
        %434 = vmatmul.f32.gmra.mxu0 %v220
        %v435 = vpop.f32.mrf.mxu0
        %v436 = vadd.f32 %v341, %v435
        %437 = vmatmul.f32.gmra.mxu0 %v221
        %v438 = vpop.f32.mrf.mxu0
        %v439 = vadd.f32 %v341, %v438
        %440 = vmatmul.f32.gmra.mxu0 %v222
        %v441 = vpop.f32.mrf.mxu0
        %v442 = vadd.f32 %v341, %v441
        %443 = vmatmul.f32.gmra.mxu0 %v223
        %v444 = vpop.f32.mrf.mxu0
        %v445 = vadd.f32 %v341, %v444
        %446 = vmatmul.f32.gmra.mxu0 %v224
        %v447 = vpop.f32.mrf.mxu0
        %v448 = vadd.f32 %v341, %v447
        %449 = vmatmul.f32.gmra.mxu0 %v225
        %v450 = vpop.f32.mrf.mxu0
        %v451 = vadd.f32 %v341, %v450
        %452 = vmatmul.f32.gmra.mxu0 %v226
        %v453 = vpop.f32.mrf.mxu0
        %v454 = vadd.f32 %v341, %v453
        %455 = vmatmul.f32.gmra.mxu0 %v227
        %v456 = vpop.f32.mrf.mxu0
        %v457 = vadd.f32 %v341, %v456
        %458 = vmatmul.f32.gmra.mxu0 %v228
        %v459 = vpop.f32.mrf.mxu0
        %v460 = vadd.f32 %v341, %v459
        %461 = vmatmul.f32.gmra.mxu0 %v229
        %v462 = vpop.f32.mrf.mxu0
        %v463 = vadd.f32 %v341, %v462
        %464 = vmatmul.f32.gmra.mxu0 %v230
        %v465 = vpop.f32.mrf.mxu0
        %v466 = vadd.f32 %v341, %v465
        %467 = vmatmul.f32.gmra.mxu0 %v231
        %v468 = vpop.f32.mrf.mxu0
        %v469 = vadd.f32 %v341, %v468
        %470 = vmatmul.f32.gmra.mxu0 %v232
        %v471 = vpop.f32.mrf.mxu0
        %v472 = vadd.f32 %v341, %v471
        %473 = vmatmul.f32.gmra.mxu0 %v233
        %v474 = vpop.f32.mrf.mxu0
        %v475 = vadd.f32 %v341, %v474
        %476 = vmatmul.f32.gmra.mxu0 %v234
        %v477 = vpop.f32.mrf.mxu0
        %v478 = vadd.f32 %v341, %v477
        %479 = vmatmul.f32.gmra.mxu0 %v235
        %v480 = vpop.f32.mrf.mxu0
        %v481 = vadd.f32 %v341, %v480
        %482 = vmatmul.f32.gmra.mxu0 %v236
        %v483 = vpop.f32.mrf.mxu0
        %v484 = vadd.f32 %v341, %v483
        %485 = vmatmul.f32.gmra.mxu0 %v237
        %v486 = vpop.f32.mrf.mxu0
        %v487 = vadd.f32 %v341, %v486
        %488 = vmatmul.f32.gmra.mxu0 %v238
        %v489 = vpop.f32.mrf.mxu0
        %v490 = vadd.f32 %v341, %v489
        %491 = vmatmul.f32.gmra.mxu0 %v239
        %v492 = vpop.f32.mrf.mxu0
        %v493 = vadd.f32 %v341, %v492
        %494 = vmatmul.f32.gmra.mxu0 %v240
        %v495 = vpop.f32.mrf.mxu0
        %v496 = vadd.f32 %v341, %v495
        %497 = vmatmul.f32.gmra.mxu0 %v241
        %v498 = vpop.f32.mrf.mxu0
        %v499 = vadd.f32 %v341, %v498
        %500 = vmatmul.f32.gmra.mxu0 %v242
        %v501 = vpop.f32.mrf.mxu0
        %v502 = vadd.f32 %v341, %v501
        %503 = vmatmul.f32.gmra.mxu0 %v243
        %v504 = vpop.f32.mrf.mxu0
        %v505 = vadd.f32 %v341, %v504
        %506 = vmatmul.f32.gmra.mxu0 %v244
        %v507 = vpop.f32.mrf.mxu0
        %v508 = vadd.f32 %v341, %v507
        %509 = vmatmul.f32.gmra.mxu0 %v245
        %v510 = vpop.f32.mrf.mxu0
        %v511 = vadd.f32 %v341, %v510
        %512 = vmatmul.f32.gmra.mxu0 %v246
        %v513 = vpop.f32.mrf.mxu0
        %v514 = vadd.f32 %v341, %v513
        %515 = vmatmul.f32.gmra.mxu0 %v247
        %v516 = vpop.f32.mrf.mxu0
        %v517 = vadd.f32 %v341, %v516
        %518 = vmatmul.f32.gmra.mxu0 %v248
        %v519 = vpop.f32.mrf.mxu0
        %v520 = vadd.f32 %v341, %v519
        %521 = vmatmul.f32.gmra.mxu0 %v249
        %v522 = vpop.f32.mrf.mxu0
        %v523 = vadd.f32 %v341, %v522
        %524 = vmatmul.f32.gmra.mxu0 %v250
        %v525 = vpop.f32.mrf.mxu0
        %v526 = vadd.f32 %v341, %v525
        %527 = vmatmul.f32.gmra.mxu0 %v251
        %v528 = vpop.f32.mrf.mxu0
        %v529 = vadd.f32 %v341, %v528
        %530 = vmatmul.f32.gmra.mxu0 %v252
        %v531 = vpop.f32.mrf.mxu0
        %v532 = vadd.f32 %v341, %v531
        %533 = vmatmul.f32.gmra.mxu0 %v253
        %v534 = vpop.f32.mrf.mxu0
        %v535 = vadd.f32 %v341, %v534
        %536 = vmatmul.f32.gmra.mxu0 %v254
        %v537 = vpop.f32.mrf.mxu0
        %v538 = vadd.f32 %v341, %v537
        %539 = vmatmul.f32.gmra.mxu0 %v255
        %v540 = vpop.f32.mrf.mxu0
        %v541 = vadd.f32 %v341, %v540
        %542 = vmatmul.f32.gmra.mxu0 %v256
        %v543 = vpop.f32.mrf.mxu0
        %v544 = vadd.f32 %v341, %v543
        %545 = vmatmul.f32.gmra.mxu0 %v257
        %v546 = vpop.f32.mrf.mxu0
        %v547 = vadd.f32 %v341, %v546
        %548 = vmatmul.f32.gmra.mxu0 %v258
        %v549 = vpop.f32.mrf.mxu0
        %v550 = vadd.f32 %v341, %v549
        %551 = vmatmul.f32.gmra.mxu0 %v259
        %v552 = vpop.f32.mrf.mxu0
        %v553 = vadd.f32 %v341, %v552
        %554 = vmatmul.f32.gmra.mxu0 %v260
        %v555 = vpop.f32.mrf.mxu0
        %v556 = vadd.f32 %v341, %v555
        %557 = vmatmul.f32.gmra.mxu0 %v261
        %v558 = vpop.f32.mrf.mxu0
        %v559 = vadd.f32 %v341, %v558
        %560 = vmatmul.f32.gmra.mxu0 %v262
        %v561 = vpop.f32.mrf.mxu0
        %v562 = vadd.f32 %v341, %v561
        %563 = vmatmul.f32.gmra.mxu0 %v263
        %v564 = vpop.f32.mrf.mxu0
        %v565 = vadd.f32 %v341, %v564
        %566 = vmatmul.f32.gmra.mxu0 %v264
        %v567 = vpop.f32.mrf.mxu0
        %v568 = vadd.f32 %v341, %v567
        %569 = vmatmul.f32.gmra.mxu0 %v265
        %v570 = vpop.f32.mrf.mxu0
        %v571 = vadd.f32 %v341, %v570
        %572 = vmatmul.f32.gmra.mxu0 %v266
        %v573 = vpop.f32.mrf.mxu0
        %v574 = vadd.f32 %v341, %v573
        %575 = vmatmul.f32.gmra.mxu0 %v267
        %v576 = vpop.f32.mrf.mxu0
        %v577 = vadd.f32 %v341, %v576
        %578 = vmatmul.f32.gmra.mxu0 %v268
        %v579 = vpop.f32.mrf.mxu0
        %v580 = vadd.f32 %v341, %v579
        %581 = vmatmul.f32.gmra.mxu0 %v269
        %v582 = vpop.f32.mrf.mxu0
        %v583 = vadd.f32 %v341, %v582
        %584 = vmatmul.f32.gmra.mxu0 %v270
        %v585 = vpop.f32.mrf.mxu0
        %v586 = vadd.f32 %v341, %v585
        %587 = vmatmul.f32.gmra.mxu0 %v271
        %v588 = vpop.f32.mrf.mxu0
        %v589 = vadd.f32 %v341, %v588
        %590 = vmatmul.f32.gmra.mxu0 %v272
        %v591 = vpop.f32.mrf.mxu0
        %v592 = vadd.f32 %v341, %v591
        %593 = vmatmul.f32.gmra.mxu0 %v273
        %v594 = vpop.f32.mrf.mxu0
        %v595 = vadd.f32 %v341, %v594
        %596 = vmatmul.f32.gmra.mxu0 %v274
        %v597 = vpop.f32.mrf.mxu0
        %v598 = vadd.f32 %v341, %v597
        %599 = vmatmul.f32.gmra.mxu0 %v275
        %v600 = vpop.f32.mrf.mxu0
        %v601 = vadd.f32 %v341, %v600
        %602 = vmatmul.f32.gmra.mxu0 %v276
        %v603 = vpop.f32.mrf.mxu0
        %v604 = vadd.f32 %v341, %v603
        %605 = vmatmul.f32.gmra.mxu0 %v277
        %v606 = vpop.f32.mrf.mxu0
        %v607 = vadd.f32 %v341, %v606
        %608 = vmatmul.f32.gmra.mxu0 %v278
        %v609 = vpop.f32.mrf.mxu0
        %v610 = vadd.f32 %v341, %v609
        %611 = vmatmul.f32.gmra.mxu0 %v279
        %v612 = vpop.f32.mrf.mxu0
        %v613 = vadd.f32 %v341, %v612
        %614 = vmatmul.f32.gmra.mxu0 %v280
        %v615 = vpop.f32.mrf.mxu0
        %v616 = vadd.f32 %v341, %v615
        %617 = vmatmul.f32.gmra.mxu0 %v281
        %v618 = vpop.f32.mrf.mxu0
        %v619 = vadd.f32 %v341, %v618
        %620 = vmatmul.f32.gmra.mxu0 %v282
        %v621 = vpop.f32.mrf.mxu0
        %v622 = vadd.f32 %v341, %v621
        %623 = vmatmul.f32.gmra.mxu0 %v283
        %v624 = vpop.f32.mrf.mxu0
        %v625 = vadd.f32 %v341, %v624
        %626 = vmatmul.f32.gmra.mxu0 %v284
        %v627 = vpop.f32.mrf.mxu0
        %v628 = vadd.f32 %v341, %v627
        %629 = vmatmul.f32.gmra.mxu0 %v285
        %v630 = vpop.f32.mrf.mxu0
        %v631 = vadd.f32 %v341, %v630
        %632 = vmatmul.f32.gmra.mxu0 %v286
        %v633 = vpop.f32.mrf.mxu0
        %v634 = vadd.f32 %v341, %v633
        %635 = vmatmul.f32.gmra.mxu0 %v287
        %v636 = vpop.f32.mrf.mxu0
        %v637 = vadd.f32 %v341, %v636
        %638 = vmatmul.f32.gmra.mxu0 %v288
        %v639 = vpop.f32.mrf.mxu0
        %v640 = vadd.f32 %v341, %v639
        %641 = vmatmul.f32.gmra.mxu0 %v289
        %v642 = vpop.f32.mrf.mxu0
        %v643 = vadd.f32 %v341, %v642
        %644 = vmatmul.f32.gmra.mxu0 %v290
        %v645 = vpop.f32.mrf.mxu0
        %v646 = vadd.f32 %v341, %v645
        %647 = vmatmul.f32.gmra.mxu0 %v291
        %v648 = vpop.f32.mrf.mxu0
        %v649 = vadd.f32 %v341, %v648
        %650 = vmatmul.f32.gmra.mxu0 %v292
        %v651 = vpop.f32.mrf.mxu0
        %v652 = vadd.f32 %v341, %v651
        %653 = vmatmul.f32.gmra.mxu0 %v293
        %v654 = vpop.f32.mrf.mxu0
        %v655 = vadd.f32 %v341, %v654
        %656 = vmatmul.f32.gmra.mxu0 %v294
        %v657 = vpop.f32.mrf.mxu0
        %v658 = vadd.f32 %v341, %v657
        %659 = vmatmul.f32.gmra.mxu0 %v295
        %v660 = vpop.f32.mrf.mxu0
        %v661 = vadd.f32 %v341, %v660
        %662 = vmatmul.f32.gmra.mxu0 %v296
        %v663 = vpop.f32.mrf.mxu0
        %v664 = vadd.f32 %v341, %v663
        %665 = vmatmul.f32.gmra.mxu0 %v297
        %v666 = vpop.f32.mrf.mxu0
        %v667 = vadd.f32 %v341, %v666
        %668 = vmatmul.f32.gmra.mxu0 %v298
        %v669 = vpop.f32.mrf.mxu0
        %v670 = vadd.f32 %v341, %v669
        %671 = vmatmul.f32.gmra.mxu0 %v299
        %v672 = vpop.f32.mrf.mxu0
        %v673 = vadd.f32 %v341, %v672
        %674 = vmatmul.f32.gmra.mxu0 %v300
        %v675 = vpop.f32.mrf.mxu0
        %v676 = vadd.f32 %v341, %v675
        %677 = vmatmul.f32.gmra.mxu0 %v301
        %v678 = vpop.f32.mrf.mxu0
        %v679 = vadd.f32 %v341, %v678
        %680 = vmatmul.f32.gmra.mxu0 %v302
        %v681 = vpop.f32.mrf.mxu0
        %v682 = vadd.f32 %v341, %v681
        %683 = vmatmul.f32.gmra.mxu0 %v303
        %v684 = vpop.f32.mrf.mxu0
        %v685 = vadd.f32 %v341, %v684
        %686 = vmatmul.f32.gmra.mxu0 %v304
        %v687 = vpop.f32.mrf.mxu0
        %v688 = vadd.f32 %v341, %v687
        %689 = vmatmul.f32.gmra.mxu0 %v305
        %v690 = vpop.f32.mrf.mxu0
        %v691 = vadd.f32 %v341, %v690
        %692 = vmatmul.f32.gmra.mxu0 %v306
        %v693 = vpop.f32.mrf.mxu0
        %v694 = vadd.f32 %v341, %v693
        %695 = vmatmul.f32.gmra.mxu0 %v307
        %v696 = vpop.f32.mrf.mxu0
        %v697 = vadd.f32 %v341, %v696
        %698 = vmatmul.f32.gmra.mxu0 %v308
        %v699 = vpop.f32.mrf.mxu0
        %v700 = vadd.f32 %v341, %v699
        %701 = vmatmul.f32.gmra.mxu0 %v309
        %v702 = vpop.f32.mrf.mxu0
        %v703 = vadd.f32 %v341, %v702
        %704 = vmatmul.f32.gmra.mxu0 %v310
        %v705 = vpop.f32.mrf.mxu0
        %v706 = vadd.f32 %v341, %v705
        %707 = vmatmul.f32.gmra.mxu0 %v311
        %v708 = vpop.f32.mrf.mxu0
        %v709 = vadd.f32 %v341, %v708
        %710 = vmatmul.f32.gmra.mxu0 %v312
        %v711 = vpop.f32.mrf.mxu0
        %v712 = vadd.f32 %v341, %v711
        %713 = vmatmul.f32.gmra.mxu0 %v313
        %v714 = vpop.f32.mrf.mxu0
        %v715 = vadd.f32 %v341, %v714
        %716 = vmatmul.f32.gmra.mxu0 %v314
        %v717 = vpop.f32.mrf.mxu0
        %v718 = vadd.f32 %v341, %v717
        %719 = vmatmul.f32.gmra.mxu0 %v315
        %v720 = vpop.f32.mrf.mxu0
        %v721 = vadd.f32 %v341, %v720
        %722 = vmatmul.f32.gmra.mxu0 %v316
        %v723 = vpop.f32.mrf.mxu0
        %v724 = vadd.f32 %v341, %v723
        %725 = vmatmul.f32.gmra.mxu0 %v317
        %v726 = vpop.f32.mrf.mxu0
        %v727 = vadd.f32 %v341, %v726
        %728 = vmatmul.f32.gmra.mxu0 %v318
        %v729 = vpop.f32.mrf.mxu0
        %v730 = vadd.f32 %v341, %v729
        %731 = vmatmul.f32.gmra.mxu0 %v319
        %v732 = vpop.f32.mrf.mxu0
        %v733 = vadd.f32 %v341, %v732
        %734 = vmatmul.f32.gmra.mxu0 %v320
        %v735 = vpop.f32.mrf.mxu0
        %v736 = vadd.f32 %v341, %v735
        %737 = vmatmul.f32.gmra.mxu0 %v321
        %v738 = vpop.f32.mrf.mxu0
        %v739 = vadd.f32 %v341, %v738
        %740 = vmatmul.f32.gmra.mxu0 %v322
        %v741 = vpop.f32.mrf.mxu0
        %v742 = vadd.f32 %v341, %v741
        %743 = vdwg.mxu0
        %v744 = vmax.f32 %v361, 0.01
        %v745 = vmax.f32 %v364, 0.01
        %v746 = vmax.f32 %v367, 0.01
        %v747 = vmax.f32 %v370, 0.01
        %v748 = vmax.f32 %v373, 0.01
        %v749 = vmax.f32 %v376, 0.01
        %v750 = vmax.f32 %v379, 0.01
        %v751 = vmax.f32 %v382, 0.01
        %v752 = vmax.f32 %v385, 0.01
        %v753 = vmax.f32 %v388, 0.01
        %v754 = vmax.f32 %v391, 0.01
        %v755 = vmax.f32 %v394, 0.01
        %v756 = vmax.f32 %v397, 0.01
        %v757 = vmax.f32 %v400, 0.01
        %v758 = vmax.f32 %v403, 0.01
        %v759 = vmax.f32 %v406, 0.01
        %v760 = vmax.f32 %v409, 0.01
        %v761 = vmax.f32 %v412, 0.01
        %v762 = vmax.f32 %v415, 0.01
        %v763 = vmax.f32 %v418, 0.01
        %v764 = vmax.f32 %v421, 0.01
        %v765 = vmax.f32 %v424, 0.01
        %v766 = vmax.f32 %v427, 0.01
        %v767 = vmax.f32 %v430, 0.01
        %v768 = vmax.f32 %v433, 0.01
        %v769 = vmax.f32 %v436, 0.01
        %v770 = vmax.f32 %v439, 0.01
        %v771 = vmax.f32 %v442, 0.01
        %v772 = vmax.f32 %v445, 0.01
        %v773 = vmax.f32 %v448, 0.01
        %v774 = vmax.f32 %v451, 0.01
        %v775 = vmax.f32 %v454, 0.01
        %v776 = vmax.f32 %v457, 0.01
        %v777 = vmax.f32 %v460, 0.01
        %v778 = vmax.f32 %v463, 0.01
        %v779 = vmax.f32 %v466, 0.01
        %v780 = vmax.f32 %v469, 0.01
        %v781 = vmax.f32 %v472, 0.01
        %v782 = vmax.f32 %v475, 0.01
        %v783 = vmax.f32 %v478, 0.01
        %v784 = vmax.f32 %v481, 0.01
        %v785 = vmax.f32 %v484, 0.01
        %v786 = vmax.f32 %v487, 0.01
        %v787 = vmax.f32 %v490, 0.01
        %v788 = vmax.f32 %v493, 0.01
        %v789 = vmax.f32 %v496, 0.01
        %v790 = vmax.f32 %v499, 0.01
        %v791 = vmax.f32 %v502, 0.01
        %v792 = vmax.f32 %v505, 0.01
        %v793 = vmax.f32 %v508, 0.01
        %v794 = vmax.f32 %v511, 0.01
        %v795 = vmax.f32 %v514, 0.01
        %v796 = vmax.f32 %v517, 0.01
        %v797 = vmax.f32 %v520, 0.01
        %v798 = vmax.f32 %v523, 0.01
        %v799 = vmax.f32 %v526, 0.01
        %v800 = vmax.f32 %v529, 0.01
        %v801 = vmax.f32 %v532, 0.01
        %v802 = vmax.f32 %v535, 0.01
        %v803 = vmax.f32 %v538, 0.01
        %v804 = vmax.f32 %v541, 0.01
        %v805 = vmax.f32 %v544, 0.01
        %v806 = vmax.f32 %v547, 0.01
        %v807 = vmax.f32 %v550, 0.01
        %v808 = vmax.f32 %v553, 0.01
        %v809 = vmax.f32 %v556, 0.01
        %v810 = vmax.f32 %v559, 0.01
        %v811 = vmax.f32 %v562, 0.01
        %v812 = vmax.f32 %v565, 0.01
        %v813 = vmax.f32 %v568, 0.01
        %v814 = vmax.f32 %v571, 0.01
        %v815 = vmax.f32 %v574, 0.01
        %v816 = vmax.f32 %v577, 0.01
        %v817 = vmax.f32 %v580, 0.01
        %v818 = vmax.f32 %v583, 0.01
        %v819 = vmax.f32 %v586, 0.01
        %v820 = vmax.f32 %v589, 0.01
        %v821 = vmax.f32 %v592, 0.01
        %v822 = vmax.f32 %v595, 0.01
        %v823 = vmax.f32 %v598, 0.01
        %v824 = vmax.f32 %v601, 0.01
        %v825 = vmax.f32 %v604, 0.01
        %v826 = vmax.f32 %v607, 0.01
        %v827 = vmax.f32 %v610, 0.01
        %v828 = vmax.f32 %v613, 0.01
        %v829 = vmax.f32 %v616, 0.01
        %v830 = vmax.f32 %v619, 0.01
        %v831 = vmax.f32 %v622, 0.01
        %v832 = vmax.f32 %v625, 0.01
        %v833 = vmax.f32 %v628, 0.01
        %v834 = vmax.f32 %v631, 0.01
        %v835 = vmax.f32 %v634, 0.01
        %v836 = vmax.f32 %v637, 0.01
        %v837 = vmax.f32 %v640, 0.01
        %v838 = vmax.f32 %v643, 0.01
        %v839 = vmax.f32 %v646, 0.01
        %v840 = vmax.f32 %v649, 0.01
        %v841 = vmax.f32 %v652, 0.01
        %v842 = vmax.f32 %v655, 0.01
        %v843 = vmax.f32 %v658, 0.01
        %v844 = vmax.f32 %v661, 0.01
        %v845 = vmax.f32 %v664, 0.01
        %v846 = vmax.f32 %v667, 0.01
        %v847 = vmax.f32 %v670, 0.01
        %v848 = vmax.f32 %v673, 0.01
        %v849 = vmax.f32 %v676, 0.01
        %v850 = vmax.f32 %v679, 0.01
        %v851 = vmax.f32 %v682, 0.01
        %v852 = vmax.f32 %v685, 0.01
        %v853 = vmax.f32 %v688, 0.01
        %v854 = vmax.f32 %v691, 0.01
        %v855 = vmax.f32 %v694, 0.01
        %v856 = vmax.f32 %v697, 0.01
        %v857 = vmax.f32 %v700, 0.01
        %v858 = vmax.f32 %v703, 0.01
        %v859 = vmax.f32 %v706, 0.01
        %v860 = vmax.f32 %v709, 0.01
        %v861 = vmax.f32 %v712, 0.01
        %v862 = vmax.f32 %v715, 0.01
        %v863 = vmax.f32 %v718, 0.01
        %v864 = vmax.f32 %v721, 0.01
        %v865 = vmax.f32 %v724, 0.01
        %v866 = vmax.f32 %v727, 0.01
        %v867 = vmax.f32 %v730, 0.01
        %v868 = vmax.f32 %v733, 0.01
        %v869 = vmax.f32 %v736, 0.01
        %v870 = vmax.f32 %v739, 0.01
        %v871 = vmax.f32 %v742, 0.01
        %v872 = vmin.f32 %v744, 0.5
        %v873 = vmin.f32 %v745, 0.5
        %v874 = vmin.f32 %v746, 0.5
        %v875 = vmin.f32 %v747, 0.5
        %v876 = vmin.f32 %v748, 0.5
        %v877 = vmin.f32 %v749, 0.5
        %v878 = vmin.f32 %v750, 0.5
        %v879 = vmin.f32 %v751, 0.5
        %v880 = vmin.f32 %v752, 0.5
        %v881 = vmin.f32 %v753, 0.5
        %v882 = vmin.f32 %v754, 0.5
        %v883 = vmin.f32 %v755, 0.5
        %v884 = vmin.f32 %v756, 0.5
        %v885 = vmin.f32 %v757, 0.5
        %v886 = vmin.f32 %v758, 0.5
        %v887 = vmin.f32 %v759, 0.5
        %v888 = vmin.f32 %v760, 0.5
        %v889 = vmin.f32 %v761, 0.5
        %v890 = vmin.f32 %v762, 0.5
        %v891 = vmin.f32 %v763, 0.5
        %v892 = vmin.f32 %v764, 0.5
        %v893 = vmin.f32 %v765, 0.5
        %v894 = vmin.f32 %v766, 0.5
        %v895 = vmin.f32 %v767, 0.5
        %v896 = vmin.f32 %v768, 0.5
        %v897 = vmin.f32 %v769, 0.5
        %v898 = vmin.f32 %v770, 0.5
        %v899 = vmin.f32 %v771, 0.5
        %v900 = vmin.f32 %v772, 0.5
        %v901 = vmin.f32 %v773, 0.5
        %v902 = vmin.f32 %v774, 0.5
        %v903 = vmin.f32 %v775, 0.5
        %v904 = vmin.f32 %v776, 0.5
        %v905 = vmin.f32 %v777, 0.5
        %v906 = vmin.f32 %v778, 0.5
        %v907 = vmin.f32 %v779, 0.5
        %v908 = vmin.f32 %v780, 0.5
        %v909 = vmin.f32 %v781, 0.5
        %v910 = vmin.f32 %v782, 0.5
        %v911 = vmin.f32 %v783, 0.5
        %v912 = vmin.f32 %v784, 0.5
        %v913 = vmin.f32 %v785, 0.5
        %v914 = vmin.f32 %v786, 0.5
        %v915 = vmin.f32 %v787, 0.5
        %v916 = vmin.f32 %v788, 0.5
        %v917 = vmin.f32 %v789, 0.5
        %v918 = vmin.f32 %v790, 0.5
        %v919 = vmin.f32 %v791, 0.5
        %v920 = vmin.f32 %v792, 0.5
        %v921 = vmin.f32 %v793, 0.5
        %v922 = vmin.f32 %v794, 0.5
        %v923 = vmin.f32 %v795, 0.5
        %v924 = vmin.f32 %v796, 0.5
        %v925 = vmin.f32 %v797, 0.5
        %v926 = vmin.f32 %v798, 0.5
        %v927 = vmin.f32 %v799, 0.5
        %v928 = vmin.f32 %v800, 0.5
        %v929 = vmin.f32 %v801, 0.5
        %v930 = vmin.f32 %v802, 0.5
        %v931 = vmin.f32 %v803, 0.5
        %v932 = vmin.f32 %v804, 0.5
        %v933 = vmin.f32 %v805, 0.5
        %v934 = vmin.f32 %v806, 0.5
        %v935 = vmin.f32 %v807, 0.5
        %v936 = vmin.f32 %v808, 0.5
        %v937 = vmin.f32 %v809, 0.5
        %v938 = vmin.f32 %v810, 0.5
        %v939 = vmin.f32 %v811, 0.5
        %v940 = vmin.f32 %v812, 0.5
        %v941 = vmin.f32 %v813, 0.5
        %v942 = vmin.f32 %v814, 0.5
        %v943 = vmin.f32 %v815, 0.5
        %v944 = vmin.f32 %v816, 0.5
        %v945 = vmin.f32 %v817, 0.5
        %v946 = vmin.f32 %v818, 0.5
        %v947 = vmin.f32 %v819, 0.5
        %v948 = vmin.f32 %v820, 0.5
        %v949 = vmin.f32 %v821, 0.5
        %v950 = vmin.f32 %v822, 0.5
        %v951 = vmin.f32 %v823, 0.5
        %v952 = vmin.f32 %v824, 0.5
        %v953 = vmin.f32 %v825, 0.5
        %v954 = vmin.f32 %v826, 0.5
        %v955 = vmin.f32 %v827, 0.5
        %v956 = vmin.f32 %v828, 0.5
        %v957 = vmin.f32 %v829, 0.5
        %v958 = vmin.f32 %v830, 0.5
        %v959 = vmin.f32 %v831, 0.5
        %v960 = vmin.f32 %v832, 0.5
        %v961 = vmin.f32 %v833, 0.5
        %v962 = vmin.f32 %v834, 0.5
        %v963 = vmin.f32 %v835, 0.5
        %v964 = vmin.f32 %v836, 0.5
        %v965 = vmin.f32 %v837, 0.5
        %v966 = vmin.f32 %v838, 0.5
        %v967 = vmin.f32 %v839, 0.5
        %v968 = vmin.f32 %v840, 0.5
        %v969 = vmin.f32 %v841, 0.5
        %v970 = vmin.f32 %v842, 0.5
        %v971 = vmin.f32 %v843, 0.5
        %v972 = vmin.f32 %v844, 0.5
        %v973 = vmin.f32 %v845, 0.5
        %v974 = vmin.f32 %v846, 0.5
        %v975 = vmin.f32 %v847, 0.5
        %v976 = vmin.f32 %v848, 0.5
        %v977 = vmin.f32 %v849, 0.5
        %v978 = vmin.f32 %v850, 0.5
        %v979 = vmin.f32 %v851, 0.5
        %v980 = vmin.f32 %v852, 0.5
        %v981 = vmin.f32 %v853, 0.5
        %v982 = vmin.f32 %v854, 0.5
        %v983 = vmin.f32 %v855, 0.5
        %v984 = vmin.f32 %v856, 0.5
        %v985 = vmin.f32 %v857, 0.5
        %v986 = vmin.f32 %v858, 0.5
        %v987 = vmin.f32 %v859, 0.5
        %v988 = vmin.f32 %v860, 0.5
        %v989 = vmin.f32 %v861, 0.5
        %v990 = vmin.f32 %v862, 0.5
        %v991 = vmin.f32 %v863, 0.5
        %v992 = vmin.f32 %v864, 0.5
        %v993 = vmin.f32 %v865, 0.5
        %v994 = vmin.f32 %v866, 0.5
        %v995 = vmin.f32 %v867, 0.5
        %v996 = vmin.f32 %v868, 0.5
        %v997 = vmin.f32 %v869, 0.5
        %v998 = vmin.f32 %v870, 0.5
        %v999 = vmin.f32 %v871, 0.5
        %vm1000 = vcmask 261120
        %1001 = vst.msk [vmem:[%s193] sm:$0xff] %vm1000, %v872
        %1002 = vst.msk [vmem:[%s193 + $0x8] sm:$0xff] %vm1000, %v873
        %1003 = vst.msk [vmem:[%s193 + $0x10] sm:$0xff] %vm1000, %v874
        %1004 = vst.msk [vmem:[%s193 + $0x18] sm:$0xff] %vm1000, %v875
        %1005 = vst.msk [vmem:[%s193 + $0x20] sm:$0xff] %vm1000, %v876
        %1006 = vst.msk [vmem:[%s193 + $0x28] sm:$0xff] %vm1000, %v877
        %1007 = vst.msk [vmem:[%s193 + $0x30] sm:$0xff] %vm1000, %v878
        %1008 = vst.msk [vmem:[%s193 + $0x38] sm:$0xff] %vm1000, %v879
        %1009 = vst.msk [vmem:[%s193 + $0x40] sm:$0xff] %vm1000, %v880
        %1010 = vst.msk [vmem:[%s193 + $0x48] sm:$0xff] %vm1000, %v881
        %1011 = vst.msk [vmem:[%s193 + $0x50] sm:$0xff] %vm1000, %v882
        %1012 = vst.msk [vmem:[%s193 + $0x58] sm:$0xff] %vm1000, %v883
        %1013 = vst.msk [vmem:[%s193 + $0x60] sm:$0xff] %vm1000, %v884
        %1014 = vst.msk [vmem:[%s193 + $0x68] sm:$0xff] %vm1000, %v885
        %1015 = vst.msk [vmem:[%s193 + $0x70] sm:$0xff] %vm1000, %v886
        %1016 = vst.msk [vmem:[%s193 + $0x78] sm:$0xff] %vm1000, %v887
        %1017 = vst.msk [vmem:[%s193 + $0x80] sm:$0xff] %vm1000, %v888
        %1018 = vst.msk [vmem:[%s193 + $0x88] sm:$0xff] %vm1000, %v889
        %1019 = vst.msk [vmem:[%s193 + $0x90] sm:$0xff] %vm1000, %v890
        %1020 = vst.msk [vmem:[%s193 + $0x98] sm:$0xff] %vm1000, %v891
        %1021 = vst.msk [vmem:[%s193 + $0xa0] sm:$0xff] %vm1000, %v892
        %1022 = vst.msk [vmem:[%s193 + $0xa8] sm:$0xff] %vm1000, %v893
        %1023 = vst.msk [vmem:[%s193 + $0xb0] sm:$0xff] %vm1000, %v894
        %1024 = vst.msk [vmem:[%s193 + $0xb8] sm:$0xff] %vm1000, %v895
        %1025 = vst.msk [vmem:[%s193 + $0xc0] sm:$0xff] %vm1000, %v896
        %1026 = vst.msk [vmem:[%s193 + $0xc8] sm:$0xff] %vm1000, %v897
        %1027 = vst.msk [vmem:[%s193 + $0xd0] sm:$0xff] %vm1000, %v898
        %1028 = vst.msk [vmem:[%s193 + $0xd8] sm:$0xff] %vm1000, %v899
        %1029 = vst.msk [vmem:[%s193 + $0xe0] sm:$0xff] %vm1000, %v900
        %1030 = vst.msk [vmem:[%s193 + $0xe8] sm:$0xff] %vm1000, %v901
        %1031 = vst.msk [vmem:[%s193 + $0xf0] sm:$0xff] %vm1000, %v902
        %1032 = vst.msk [vmem:[%s193 + $0xf8] sm:$0xff] %vm1000, %v903
        %1033 = vst.msk [vmem:[%s193 + $0x100] sm:$0xff] %vm1000, %v904
        %1034 = vst.msk [vmem:[%s193 + $0x108] sm:$0xff] %vm1000, %v905
        %1035 = vst.msk [vmem:[%s193 + $0x110] sm:$0xff] %vm1000, %v906
        %1036 = vst.msk [vmem:[%s193 + $0x118] sm:$0xff] %vm1000, %v907
        %1037 = vst.msk [vmem:[%s193 + $0x120] sm:$0xff] %vm1000, %v908
        %1038 = vst.msk [vmem:[%s193 + $0x128] sm:$0xff] %vm1000, %v909
        %1039 = vst.msk [vmem:[%s193 + $0x130] sm:$0xff] %vm1000, %v910
        %1040 = vst.msk [vmem:[%s193 + $0x138] sm:$0xff] %vm1000, %v911
        %1041 = vst.msk [vmem:[%s193 + $0x140] sm:$0xff] %vm1000, %v912
        %1042 = vst.msk [vmem:[%s193 + $0x148] sm:$0xff] %vm1000, %v913
        %1043 = vst.msk [vmem:[%s193 + $0x150] sm:$0xff] %vm1000, %v914
        %1044 = vst.msk [vmem:[%s193 + $0x158] sm:$0xff] %vm1000, %v915
        %1045 = vst.msk [vmem:[%s193 + $0x160] sm:$0xff] %vm1000, %v916
        %1046 = vst.msk [vmem:[%s193 + $0x168] sm:$0xff] %vm1000, %v917
        %1047 = vst.msk [vmem:[%s193 + $0x170] sm:$0xff] %vm1000, %v918
        %1048 = vst.msk [vmem:[%s193 + $0x178] sm:$0xff] %vm1000, %v919
        %1049 = vst.msk [vmem:[%s193 + $0x180] sm:$0xff] %vm1000, %v920
        %1050 = vst.msk [vmem:[%s193 + $0x188] sm:$0xff] %vm1000, %v921
        %1051 = vst.msk [vmem:[%s193 + $0x190] sm:$0xff] %vm1000, %v922
        %1052 = vst.msk [vmem:[%s193 + $0x198] sm:$0xff] %vm1000, %v923
        %1053 = vst.msk [vmem:[%s193 + $0x1a0] sm:$0xff] %vm1000, %v924
        %1054 = vst.msk [vmem:[%s193 + $0x1a8] sm:$0xff] %vm1000, %v925
        %1055 = vst.msk [vmem:[%s193 + $0x1b0] sm:$0xff] %vm1000, %v926
        %1056 = vst.msk [vmem:[%s193 + $0x1b8] sm:$0xff] %vm1000, %v927
        %1057 = vst.msk [vmem:[%s193 + $0x1c0] sm:$0xff] %vm1000, %v928
        %1058 = vst.msk [vmem:[%s193 + $0x1c8] sm:$0xff] %vm1000, %v929
        %1059 = vst.msk [vmem:[%s193 + $0x1d0] sm:$0xff] %vm1000, %v930
        %1060 = vst.msk [vmem:[%s193 + $0x1d8] sm:$0xff] %vm1000, %v931
        %1061 = vst.msk [vmem:[%s193 + $0x1e0] sm:$0xff] %vm1000, %v932
        %1062 = vst.msk [vmem:[%s193 + $0x1e8] sm:$0xff] %vm1000, %v933
        %1063 = vst.msk [vmem:[%s193 + $0x1f0] sm:$0xff] %vm1000, %v934
        %1064 = vst.msk [vmem:[%s193 + $0x1f8] sm:$0xff] %vm1000, %v935
        %1065 = vst.msk [vmem:[%s193 + $0x200] sm:$0xff] %vm1000, %v936
        %1066 = vst.msk [vmem:[%s193 + $0x208] sm:$0xff] %vm1000, %v937
        %1067 = vst.msk [vmem:[%s193 + $0x210] sm:$0xff] %vm1000, %v938
        %1068 = vst.msk [vmem:[%s193 + $0x218] sm:$0xff] %vm1000, %v939
        %1069 = vst.msk [vmem:[%s193 + $0x220] sm:$0xff] %vm1000, %v940
        %1070 = vst.msk [vmem:[%s193 + $0x228] sm:$0xff] %vm1000, %v941
        %1071 = vst.msk [vmem:[%s193 + $0x230] sm:$0xff] %vm1000, %v942
        %1072 = vst.msk [vmem:[%s193 + $0x238] sm:$0xff] %vm1000, %v943
        %1073 = vst.msk [vmem:[%s193 + $0x240] sm:$0xff] %vm1000, %v944
        %1074 = vst.msk [vmem:[%s193 + $0x248] sm:$0xff] %vm1000, %v945
        %1075 = vst.msk [vmem:[%s193 + $0x250] sm:$0xff] %vm1000, %v946
        %1076 = vst.msk [vmem:[%s193 + $0x258] sm:$0xff] %vm1000, %v947
        %1077 = vst.msk [vmem:[%s193 + $0x260] sm:$0xff] %vm1000, %v948
        %1078 = vst.msk [vmem:[%s193 + $0x268] sm:$0xff] %vm1000, %v949
        %1079 = vst.msk [vmem:[%s193 + $0x270] sm:$0xff] %vm1000, %v950
        %1080 = vst.msk [vmem:[%s193 + $0x278] sm:$0xff] %vm1000, %v951
        %1081 = vst.msk [vmem:[%s193 + $0x280] sm:$0xff] %vm1000, %v952
        %1082 = vst.msk [vmem:[%s193 + $0x288] sm:$0xff] %vm1000, %v953
        %1083 = vst.msk [vmem:[%s193 + $0x290] sm:$0xff] %vm1000, %v954
        %1084 = vst.msk [vmem:[%s193 + $0x298] sm:$0xff] %vm1000, %v955
        %1085 = vst.msk [vmem:[%s193 + $0x2a0] sm:$0xff] %vm1000, %v956
        %1086 = vst.msk [vmem:[%s193 + $0x2a8] sm:$0xff] %vm1000, %v957
        %1087 = vst.msk [vmem:[%s193 + $0x2b0] sm:$0xff] %vm1000, %v958
        %1088 = vst.msk [vmem:[%s193 + $0x2b8] sm:$0xff] %vm1000, %v959
        %1089 = vst.msk [vmem:[%s193 + $0x2c0] sm:$0xff] %vm1000, %v960
        %1090 = vst.msk [vmem:[%s193 + $0x2c8] sm:$0xff] %vm1000, %v961
        %1091 = vst.msk [vmem:[%s193 + $0x2d0] sm:$0xff] %vm1000, %v962
        %1092 = vst.msk [vmem:[%s193 + $0x2d8] sm:$0xff] %vm1000, %v963
        %1093 = vst.msk [vmem:[%s193 + $0x2e0] sm:$0xff] %vm1000, %v964
        %1094 = vst.msk [vmem:[%s193 + $0x2e8] sm:$0xff] %vm1000, %v965
        %1095 = vst.msk [vmem:[%s193 + $0x2f0] sm:$0xff] %vm1000, %v966
        %1096 = vst.msk [vmem:[%s193 + $0x2f8] sm:$0xff] %vm1000, %v967
        %1097 = vst.msk [vmem:[%s193 + $0x300] sm:$0xff] %vm1000, %v968
        %1098 = vst.msk [vmem:[%s193 + $0x308] sm:$0xff] %vm1000, %v969
        %1099 = vst.msk [vmem:[%s193 + $0x310] sm:$0xff] %vm1000, %v970
        %1100 = vst.msk [vmem:[%s193 + $0x318] sm:$0xff] %vm1000, %v971
        %1101 = vst.msk [vmem:[%s193 + $0x320] sm:$0xff] %vm1000, %v972
        %1102 = vst.msk [vmem:[%s193 + $0x328] sm:$0xff] %vm1000, %v973
        %1103 = vst.msk [vmem:[%s193 + $0x330] sm:$0xff] %vm1000, %v974
        %1104 = vst.msk [vmem:[%s193 + $0x338] sm:$0xff] %vm1000, %v975
        %1105 = vst.msk [vmem:[%s193 + $0x340] sm:$0xff] %vm1000, %v976
        %1106 = vst.msk [vmem:[%s193 + $0x348] sm:$0xff] %vm1000, %v977
        %1107 = vst.msk [vmem:[%s193 + $0x350] sm:$0xff] %vm1000, %v978
        %1108 = vst.msk [vmem:[%s193 + $0x358] sm:$0xff] %vm1000, %v979
        %1109 = vst.msk [vmem:[%s193 + $0x360] sm:$0xff] %vm1000, %v980
        %1110 = vst.msk [vmem:[%s193 + $0x368] sm:$0xff] %vm1000, %v981
        %1111 = vst.msk [vmem:[%s193 + $0x370] sm:$0xff] %vm1000, %v982
        %1112 = vst.msk [vmem:[%s193 + $0x378] sm:$0xff] %vm1000, %v983
        %1113 = vst.msk [vmem:[%s193 + $0x380] sm:$0xff] %vm1000, %v984
        %1114 = vst.msk [vmem:[%s193 + $0x388] sm:$0xff] %vm1000, %v985
        %1115 = vst.msk [vmem:[%s193 + $0x390] sm:$0xff] %vm1000, %v986
        %1116 = vst.msk [vmem:[%s193 + $0x398] sm:$0xff] %vm1000, %v987
        %1117 = vst.msk [vmem:[%s193 + $0x3a0] sm:$0xff] %vm1000, %v988
        %1118 = vst.msk [vmem:[%s193 + $0x3a8] sm:$0xff] %vm1000, %v989
        %1119 = vst.msk [vmem:[%s193 + $0x3b0] sm:$0xff] %vm1000, %v990
        %1120 = vst.msk [vmem:[%s193 + $0x3b8] sm:$0xff] %vm1000, %v991
        %1121 = vst.msk [vmem:[%s193 + $0x3c0] sm:$0xff] %vm1000, %v992
        %1122 = vst.msk [vmem:[%s193 + $0x3c8] sm:$0xff] %vm1000, %v993
        %1123 = vst.msk [vmem:[%s193 + $0x3d0] sm:$0xff] %vm1000, %v994
        %1124 = vst.msk [vmem:[%s193 + $0x3d8] sm:$0xff] %vm1000, %v995
        %1125 = vst.msk [vmem:[%s193 + $0x3e0] sm:$0xff] %vm1000, %v996
        %1126 = vst.msk [vmem:[%s193 + $0x3e8] sm:$0xff] %vm1000, %v997
        %1127 = vst.msk [vmem:[%s193 + $0x3f0] sm:$0xff] %vm1000, %v998
        %1128 = vst.msk [vmem:[%s193 + $0x3f8] sm:$0xff] %vm1000, %v999
        %s1129 = smul.u32 128, %s17
        %p1130 = scmp.lt.s32.totalorder %s1129, 255
        %s1131 = scalar_select %p1130, %s1129, 255
        %s1132 = smul.addr %s1131, 8
        %s1133 = scalar_lea.vmem %s3, %s1132
        // Predicated region
        $region37: #{tpu_custom_call.1} parent=31 // pred_check
          %p1134 = pneg %p103
        $region38: #{tpu_custom_call.1} parent=31 // pred_check_branch
          %1136 = sbr.rel (%p1134) target = $region40
        $region39: #{tpu_custom_call.1} parent=31 // pred_region
          %s1137 = smul.u32 128, %s17
        $region40: #{tpu_custom_call.1} parent=31 // pred_fallthru
          _
      $region32: #{tpu_custom_call.1} parent=5 // pred_fallthru
        _
      %p1138 = scmp.le.s32.totalorder 2, %s12
      // Predicated region
      $region41: #{tpu_custom_call.1} parent=5 // pred_check
        %p1139 = pneg %p1138
      $region42: #{tpu_custom_call.1} parent=5 // pred_check_branch
        %1141 = sbr.rel (%p1139) target = $region44
      $region43: #{tpu_custom_call.1} parent=5 // pred_region
        %s1142 = ssub.s32 %s12, 2
        // Predicated region
        $region45: #{tpu_custom_call.1} parent=43 // pred_check
          %p1143 = pneg %p109
        $region46: #{tpu_custom_call.1} parent=43 // pred_check_branch
          %1145 = sbr.rel (%p1143) target = $region48
        $region47: #{tpu_custom_call.1} parent=43 // pred_region
          %s1146 = smul.u32 128, %s18
          %p1147 = scmp.lt.s32.totalorder %s1146, 255
          %s1148 = scalar_select %p1147, %s1146, 255
          %s1149 = smul.addr %s1148, 8
          %s1150 = scalar_lea.vmem %s3, %s1149
        $region48: #{tpu_custom_call.1} parent=43 // pred_fallthru
          _
      $region44: #{tpu_custom_call.1} parent=5 // pred_fallthru
        _
    $region6: #{tpu_custom_call.1} parent=1 // loop_footer
      %s16 = sadd.s32 1, %s12
    $region7: #{tpu_custom_call.1} parent=1 // loop_footer_branch
      %11 = sbr.rel target = $region3
    $region8: #{tpu_custom_call.1} parent=1 // loop_exit
      _
    %1151 = vsyncpa [#allocation3], 1
    %s1152 = scalar_lea.sflag [#allocation3], 1
    %1153 = vsyncpa %s1152, 1

</llo_original>
